<compile_context>
chip_gen: v7x
topology: tpu7x:2x2x1
jax: 0.10.0
libtpu: 0.0.40
codegen_flags: <defaults>
</compile_context>

<pallas_src>
import functools

import jax
import jax.numpy as jnp
from jax.experimental import pallas as pl
from jax.experimental.pallas import tpu as pltpu

# N:M sparsity parameters from the reference module.
SPARSE_M = 8   # group size along in_features
SPARSE_N = 2   # kept elements per group (positions 0 and 2)
SPARSE_V = 64  # vector tile (rows share the same column pattern); the fixed
               # mask is row-independent, so V does not affect the math here.


def _round_up(x, m):
    return (x + m - 1) // m * m


def _compact_k(a2d):
    """(R, K) -> (R, K//4): keep columns {0, 2} of every group of 8 (2:8)."""
    r, k = a2d.shape
    a3 = a2d.reshape(r, k // SPARSE_M, SPARSE_M)
    kept = a3[:, :, 0:3:2]  # strided slice -> columns 0 and 2
    return kept.reshape(r, (k // SPARSE_M) * SPARSE_N)


def prepare_weight(weight, compute_dtype=jnp.bfloat16):
    """One-time (module-init) weight preprocessing.

    weight: (out_features, in_features) dense storage of the 2:8 weights.
    Returns (K2, out_features) = compacted-along-K, transposed, cast weight,
    ready to be fed to srnm_spmm on every forward call.
    """
    wc = _compact_k(weight)   # (N, K2)
    wc_t = wc.T               # (K2, N) -> canonical RHS orientation for MXU
    if compute_dtype is not None:
        wc_t = wc_t.astype(compute_dtype)
    return wc_t


def _srnm_spmm_kernel(x_ref, w_ref, o_ref, acc_ref):
    """One (tm x tn) output tile, reduced over the K' grid axis.

    x_ref: (tm, tk') compacted activations; w_ref: (tk', tn) compacted,
    pre-transposed weights.  Canonical MXU contraction, f32 accumulation in
    VMEM scratch, store on the last K step.
    """
    k = pl.program_id(2)

    @pl.when(k == 0)
    def _():
        acc_ref[...] = jnp.zeros_like(acc_ref)

    acc_ref[...] += jnp.dot(
        x_ref[...], w_ref[...], preferred_element_type=jnp.float32
    )

    @pl.when(k == pl.num_programs(2) - 1)
    def _():
        o_ref[...] = acc_ref[...].astype(o_ref.dtype)


@functools.partial(
    jax.jit, static_argnames=("tm", "tn", "tk", "compute_dtype")
)
def srnm_spmm(x, wc_t, *, tm=None, tn=None, tk=None,
              compute_dtype=jnp.bfloat16):
    """Computes  reshape( flatten(x) @ (weight * mask_2of8).T ).

    x:    (..., in_features)
    wc_t: (K2, out_features) prepared weight from prepare_weight()
          where K2 = in_features // 8 * 2.
    compute_dtype: MXU operand dtype (default bf16); accumulation is f32.
    """
    in_features = x.shape[-1]
    assert in_features % SPARSE_M == 0
    K2, N = wc_t.shape
    assert K2 == (in_features // SPARSE_M) * SPARSE_N

    x2d = x.reshape(-1, in_features)          # (DM, K)
    DM = x2d.shape[0]

    # Compact X along K (keep the 2-of-8 nonzero columns) and cast in the same
    # fused pass so the only pre-kernel HBM intermediate is compute_dtype.
    xc = _compact_k(x2d)                      # (DM, K2)
    if compute_dtype is not None:
        xc = xc.astype(compute_dtype)
        wc_t = wc_t.astype(compute_dtype)     # no-op if already prepared

    # MXU-aligned bounded tile defaults; bf16 512x512x2048 double-buffered is
    # ~11 MiB -> fits the 32 MiB scoped VMEM default on v5e/v6e/v7x.
    user_tm = tm is not None
    tm = tm or (DM if DM <= 512 else 512)
    tn = tn or (N if N <= 512 else 512)
    tk = tk or (K2 if K2 <= 2048 else 2048)

    # v7x has 2 TensorCores; if the (i, j) output grid would be a single
    # block, split M into two blocks so the "parallel" axes can shard.
    if not user_tm:
        n_out_blocks = (_round_up(DM, tm) // tm) * (_round_up(N, tn) // tn)
        if n_out_blocks < 2 and DM > 8:
            tm = _round_up(-(-DM // 2), 8)

    # Pad every dimension up to a tile multiple (zero padding is exact:
    # padded K' columns contribute 0, padded M/N rows/cols are sliced off).
    DMp = _round_up(DM, tm)
    Np = _round_up(N, tn)
    K2p = _round_up(K2, tk)

    # (8,128) layout constraints when a dim is actually tiled (block != full).
    if tm != DMp:
        assert tm % 8 == 0
    if tn != Np:
        assert tn % 128 == 0
    if tk != K2p:
        assert tk % 128 == 0

    if DMp != DM or K2p != K2:
        xc = jnp.pad(xc, ((0, DMp - DM), (0, K2p - K2)))
    if K2p != K2 or Np != N:
        wc_t = jnp.pad(wc_t, ((0, K2p - K2), (0, Np - N)))

    grid = (DMp // tm, Np // tn, K2p // tk)

    elt = jnp.dtype(xc.dtype).itemsize
    out_elt = jnp.dtype(x.dtype).itemsize
    cost = pl.CostEstimate(
        flops=2 * DM * N * K2,
        transcendentals=0,
        bytes_accessed=DM * K2 * elt + K2 * N * elt + DM * N * out_elt,
    )

    out2d = pl.pallas_call(
        _srnm_spmm_kernel,
        out_shape=jax.ShapeDtypeStruct((DMp, Np), x.dtype),
        grid_spec=pltpu.PrefetchScalarGridSpec(
            num_scalar_prefetch=0,
            grid=grid,
            in_specs=[
                pl.BlockSpec((tm, tk), lambda i, j, k: (i, k)),  # X' tile
                pl.BlockSpec((tk, tn), lambda i, j, k: (k, j)),  # W'^T tile
            ],
            out_specs=pl.BlockSpec((tm, tn), lambda i, j, k: (i, j)),
            scratch_shapes=[pltpu.VMEM((tm, tn), jnp.float32)],
        ),
        compiler_params=pltpu.CompilerParams(
            dimension_semantics=("parallel", "parallel", "arbitrary"),
        ),
        cost_estimate=cost,
    )(xc, wc_t)

    if DMp != DM or Np != N:
        out2d = out2d[:DM, :N]
    return out2d.reshape(*x.shape[:-1], N)


def _reference(x, weight):
    """Pure-JAX f32 reference of the 2:8 masked linear (zero bias)."""
    K = weight.shape[1]
    col = jnp.arange(K) % SPARSE_M
    keep = (col == 0) | (col == 2)
    w_masked = weight * keep[None, :].astype(weight.dtype)
    x2d = x.reshape(-1, K)
    out = x2d @ w_masked.T
    return out.reshape(*x.shape[:-1], weight.shape[0])


if __name__ == "__main__":
    key = jax.random.PRNGKey(0)
    k_x, k_w, k_x2, k_w2 = jax.random.split(key, 4)

    # --- test 1: default bf16 compute path, small module-consistent shapes ---
    batch, seq = 2, 8
    in_features = 32             # divisible by m=8
    out_features = 64            # divisible by the sparsifier's tileM v=64

    x = jax.random.normal(k_x, (batch, seq, in_features), dtype=jnp.float32)
    weight = jax.random.normal(
        k_w, (out_features, in_features), dtype=jnp.float32
    ) * 0.05

    wc_t = prepare_weight(weight)            # one-time weight prep (bf16)
    out = jax.block_until_ready(srnm_spmm(x, wc_t))
    ref = _reference(x, weight)
    assert out.shape == (batch, seq, out_features)
    assert jnp.allclose(out, ref, atol=3e-2, rtol=3e-2), "mismatch (test 1, bf16)"

    # --- test 2: f32 path; ragged DM exercises the 2-block M split + padding ---
    batch2, seq2 = 2, 150        # DM = 300 -> tm = 152, DMp = 304
    in2, out2f = 64, 64
    x2 = jax.random.normal(k_x2, (batch2, seq2, in2), dtype=jnp.float32)
    w2 = jax.random.normal(k_w2, (out2f, in2), dtype=jnp.float32) * 0.05

    wc2_t = prepare_weight(w2, compute_dtype=jnp.float32)
    out_2 = jax.block_until_ready(
        srnm_spmm(x2, wc2_t, compute_dtype=jnp.float32)
    )
    ref_2 = _reference(x2, w2)
    assert out_2.shape == (batch2, seq2, out2f)
    assert jnp.allclose(out_2, ref_2, atol=1e-4, rtol=1e-4), "mismatch (test 2, f32)"

    print("KERNEL_OK")
</pallas_src>

<mosaic_0001>
module attributes {stable_mosaic.version = 11 : i64} {
  func.func @_srnm_spmm_kernel(%arg0: i32, %arg1: i32, %arg2: i32, %arg3: memref<8x8xbf16, #tpu.memory_space<vmem>>, %arg4: memref<8x64xbf16, #tpu.memory_space<vmem>>, %arg5: memref<8x64xf32, #tpu.memory_space<vmem>>, %arg6: memref<8x64xf32, #tpu.memory_space<vmem>>) attributes {dimension_semantics = [#tpu.dimension_semantics<parallel>, #tpu.dimension_semantics<parallel>, #tpu.dimension_semantics<arbitrary>], iteration_bounds = array<i64: 2, 1, 1>, scalar_prefetch = 0 : i64, scratch_operands = 1 : i64, tpu.core_type = #tpu.core_type<tc>, window_params = [{transform_indices = @transform_0, window_bounds = array<i64: 8, 8>}, {transform_indices = @transform_1, window_bounds = array<i64: 8, 64>}, {transform_indices = @transform_2, window_bounds = array<i64: 8, 64>}]} {
    %c0_i32 = arith.constant 0 : i32
    %0 = arith.cmpi eq, %arg2, %c0_i32 : i32
    %1 = arith.extui %0 : i1 to i32
    %c0_i32_0 = arith.constant 0 : i32
    %2 = arith.cmpi ne, %1, %c0_i32_0 : i32
    scf.if %2 {
      %cst_10 = arith.constant 0.000000e+00 : f32
      %12 = vector.broadcast %cst_10 : f32 to vector<8x64xf32>
      %c0_11 = arith.constant 0 : index
      %c0_12 = arith.constant 0 : index
      %13 = vector.load %arg6[%c0_11, %c0_12] : memref<8x64xf32, #tpu.memory_space<vmem>>, vector<8x64xf32>
      tpu.vector_store %arg6[%c0_11, %c0_12], %12 {strides = array<i32>} : memref<8x64xf32, #tpu.memory_space<vmem>>, vector<8x64xf32>,
    } else {
    }
    %c0 = arith.constant 0 : index
    %c0_1 = arith.constant 0 : index
    %3 = vector.load %arg6[%c0, %c0_1] : memref<8x64xf32, #tpu.memory_space<vmem>>, vector<8x64xf32>
    %c0_2 = arith.constant 0 : index
    %c0_3 = arith.constant 0 : index
    %4 = vector.load %arg3[%c0_2, %c0_3] : memref<8x8xbf16, #tpu.memory_space<vmem>>, vector<8x8xbf16>
    %c0_4 = arith.constant 0 : index
    %c0_5 = arith.constant 0 : index
    %5 = vector.load %arg4[%c0_4, %c0_5] : memref<8x64xbf16, #tpu.memory_space<vmem>>, vector<8x64xbf16>
    %cst = arith.constant dense<0.000000e+00> : vector<8x64xf32>
    %6 = tpu.matmul %4, %5, %cst {dimension_numbers = #tpu.dot_dimension_numbers<[1], [0], [0], [1], [0, 0, 1, 1], [], []>} : vector<8x8xbf16>, vector<8x64xbf16>, vector<8x64xf32> -> vector<8x64xf32>
    %7 = arith.addf %3, %6 : vector<8x64xf32>
    %c0_6 = arith.constant 0 : index
    %c0_7 = arith.constant 0 : index
    %8 = vector.load %arg6[%c0_6, %c0_7] : memref<8x64xf32, #tpu.memory_space<vmem>>, vector<8x64xf32>
    tpu.vector_store %arg6[%c0_6, %c0_7], %7 {strides = array<i32>} : memref<8x64xf32, #tpu.memory_space<vmem>>, vector<8x64xf32>,
    %c0_i32_8 = arith.constant 0 : i32
    %9 = arith.cmpi eq, %arg2, %c0_i32_8 : i32
    %10 = arith.extui %9 : i1 to i32
    %c0_i32_9 = arith.constant 0 : i32
    %11 = arith.cmpi ne, %10, %c0_i32_9 : i32
    scf.if %11 {
      %c0_10 = arith.constant 0 : index
      %c0_11 = arith.constant 0 : index
      %12 = vector.load %arg6[%c0_10, %c0_11] : memref<8x64xf32, #tpu.memory_space<vmem>>, vector<8x64xf32>
      %c0_12 = arith.constant 0 : index
      %c0_13 = arith.constant 0 : index
      %13 = vector.load %arg5[%c0_12, %c0_13] : memref<8x64xf32, #tpu.memory_space<vmem>>, vector<8x64xf32>
      tpu.vector_store %arg5[%c0_12, %c0_13], %12 {strides = array<i32>} : memref<8x64xf32, #tpu.memory_space<vmem>>, vector<8x64xf32>,
    } else {
    }
    return
  }
  func.func @transform_0(%arg0: i32, %arg1: i32, %arg2: i32) -> (i32, i32) {
    %c0_i32 = arith.constant 0 : i32
    return %arg0, %arg2 : i32, i32
  }
  func.func @transform_1(%arg0: i32, %arg1: i32, %arg2: i32) -> (i32, i32) {
    %c0_i32 = arith.constant 0 : i32
    return %arg2, %arg1 : i32, i32
  }
  func.func @transform_2(%arg0: i32, %arg1: i32, %arg2: i32) -> (i32, i32) {
    %c0_i32 = arith.constant 0 : i32
    return %arg0, %arg1 : i32, i32
  }
}

</mosaic_0001>

<llo_original>
// kernel: srnm_spmm.1
$region0: #{srnm_spmm.1}
  #allocation0 [shape = 'u32[]', space=smem, size = 0x4, offset = 0x4, fixed_abs, tag = 'smem constant byte address 0x4 - core index']
  #allocation1 [shape = 'u32[144,128]{1,0:T(1,128)}', space=vmem, size = 0x12000, scoped, tag = 'internal scratch']
  #allocation2 [shape = 'f32[8,64]{1,0:T(8,128)}', space=vmem, size = 0x1000, scoped, tag = 'scratch operand']
  %s0 = inlined_call_operand.vmem [shape: bf16[16,8], index: 0, kind: input, shape index: {}]
  %s1 = inlined_call_operand.vmem [shape: bf16[8,64], index: 1, kind: input, shape index: {}]
  %s2 = inlined_call_operand.hbm [shape: f32[16,64], index: 2, kind: output, shape index: {}]
  %s3 = sld [smem:[#allocation0]]
  $region49: #{srnm_spmm.1} parent=0
    _
  %s5 = ssub.s32 1, %s3
  %s6 = scalar_select 0, %s5, %s3
  $region1: #{srnm_spmm.1} parent=0
    #allocation3 [shape = 'u8[8192]{0}', space=vmem, size = 0x2000, scoped, tag = 'output window, operand 0']
    #allocation4 [shape = 's32[2]{0}', space=sflag, size = 0x8, scoped, tag = 'scoped memory for srnm_spmm.1']
    %7 = vsyncpa [#allocation4], 0
    %s8 = scalar_lea.sflag [#allocation4], 1
    %9 = vsyncpa %s8, 0
    loop: start=0, step=1, limit=4
    $region2: #{srnm_spmm.1} parent=1 // loop_pre_header
      _
    $region3: #{srnm_spmm.1} parent=1 // loop_header
      %s11 = sphi 0, %s15
      %p12 = scmp.ge.s32.totalorder %s11, 4
      %s18 = sphi 0, %s37
      %s19 = sphi 0, %s33
      %s20 = sphi 0, %s29
      %s21 = sphi 0, %s18
      %s22 = sphi 0, %s19
      %s23 = sphi 0, %s20
      %s24 = sphi 0, %s21
      %s25 = sphi 0, %s22
      %s26 = sphi 0, %s23
      %s42 = sphi 0, %s44
      %s45 = sphi 0, %s42
      %s46 = sphi 0, %s45
      %s62 = sphi 0, %s46
      %s70 = sphi 0, %s72
      %s73 = sphi 0, %s70
      %s74 = sphi 0, %s73
      %s90 = sphi 0, %s74
      %s98 = sphi 0, %s100
      %s101 = sphi 0, %s98
      %s102 = sphi 0, %s101
      %s118 = sphi 0, %s102
    $region4: #{srnm_spmm.1} parent=1 // loop_header_branch
      %14 = sbr.rel (%p12) target = $region8
    $region5: #{srnm_spmm.1} parent=1 // loop_body
      %s16 = ssub.s32 %s11, 1
      %s17 = ssub.s32 %s11, 2
      %s27 = sadd.s32 1, %s20
      %p28 = scmp.ge.s32.totalorder %s27, 1
      %s29 = scalar_select %p28, 0, %s27
      %s30 = sadd.s32 1, %s19
      %s31 = scalar_select %p28, %s30, %s19
      %p32 = scmp.ge.s32.totalorder %s31, 1
      %s33 = scalar_select %p32, 0, %s31
      %s34 = sadd.s32 1, %s18
      %s35 = scalar_select %p32, %s34, %s18
      %p36 = scmp.ge.s32.totalorder %s35, 2
      %s37 = scalar_select %p36, 0, %s35
      %s38 = ssub.s32 %s18, %s37
      %s39 = ssub.s32 %s20, %s29
      %s40 = sor.u32 %s38, %s39
      %p41 = scmp.eq.s32.totalorder %s40, 0
      %s43 = sadd.s32 %s42, 1
      %s44 = scalar_select %p41, %s42, %s43
      %p47 = pneg %p41
      %p48 = scmp.eq.s32.totalorder %s11, 1
      %p49 = por %p47, %p48
      %p50 = scmp.ne.s32.totalorder %s42, %s45
      %p51 = scmp.eq.s32.totalorder %s11, 0
      %p52 = por %p50, %p51
      %p53 = scmp.ne.s32.totalorder %s42, %s45
      %p54 = scmp.eq.s32.totalorder %s16, 1
      %p55 = por %p53, %p54
      %p56 = scmp.ne.s32.totalorder %s45, %s46
      %p57 = scmp.eq.s32.totalorder %s16, 0
      %p58 = por %p56, %p57
      %p59 = scmp.ne.s32.totalorder %s45, %s46
      %p60 = scmp.eq.s32.totalorder %s17, 1
      %p61 = por %p59, %p60
      %p63 = scmp.ne.s32.totalorder %s46, %s62
      %p64 = scmp.eq.s32.totalorder %s17, 0
      %p65 = por %p63, %p64
      %s66 = ssub.s32 %s20, %s29
      %s67 = ssub.s32 %s19, %s33
      %s68 = sor.u32 %s66, %s67
      %p69 = scmp.eq.s32.totalorder %s68, 0
      %s71 = sadd.s32 %s70, 1
      %s72 = scalar_select %p69, %s70, %s71
      %p75 = pneg %p69
      %p76 = scmp.eq.s32.totalorder %s11, 1
      %p77 = por %p75, %p76
      %p78 = scmp.ne.s32.totalorder %s70, %s73
      %p79 = scmp.eq.s32.totalorder %s11, 0
      %p80 = por %p78, %p79
      %p81 = scmp.ne.s32.totalorder %s70, %s73
      %p82 = scmp.eq.s32.totalorder %s16, 1
      %p83 = por %p81, %p82
      %p84 = scmp.ne.s32.totalorder %s73, %s74
      %p85 = scmp.eq.s32.totalorder %s16, 0
      %p86 = por %p84, %p85
      %p87 = scmp.ne.s32.totalorder %s73, %s74
      %p88 = scmp.eq.s32.totalorder %s17, 1
      %p89 = por %p87, %p88
      %p91 = scmp.ne.s32.totalorder %s74, %s90
      %p92 = scmp.eq.s32.totalorder %s17, 0
      %p93 = por %p91, %p92
      %s94 = ssub.s32 %s18, %s37
      %s95 = ssub.s32 %s19, %s33
      %s96 = sor.u32 %s94, %s95
      %p97 = scmp.eq.s32.totalorder %s96, 0
      %s99 = sadd.s32 %s98, 1
      %s100 = scalar_select %p97, %s98, %s99
      %p103 = pneg %p97
      %p104 = scmp.eq.s32.totalorder %s11, 1
      %p105 = por %p103, %p104
      %p106 = scmp.ne.s32.totalorder %s98, %s101
      %p107 = scmp.eq.s32.totalorder %s11, 0
      %p108 = por %p106, %p107
      %p109 = scmp.ne.s32.totalorder %s98, %s101
      %p110 = scmp.eq.s32.totalorder %s16, 1
      %p111 = por %p109, %p110
      %p112 = scmp.ne.s32.totalorder %s101, %s102
      %p113 = scmp.eq.s32.totalorder %s16, 0
      %p114 = por %p112, %p113
      %p115 = scmp.ne.s32.totalorder %s101, %s102
      %p116 = scmp.eq.s32.totalorder %s17, 1
      %p117 = por %p115, %p116
      %p119 = scmp.ne.s32.totalorder %s102, %s118
      %p120 = scmp.eq.s32.totalorder %s17, 0
      %p121 = por %p119, %p120
      %p122 = scmp.le.s32.totalorder 1, %s11
      %p123 = scmp.lt.s32.totalorder %s11, 3
      %p124 = pnand %p122, %p123
      %p125 = pneg %p124
      // Predicated region
      $region9: #{srnm_spmm.1} parent=5 // pred_check
        _
      $region10: #{srnm_spmm.1} parent=5 // pred_check_branch
        %127 = sbr.rel (%p124) target = $region12
      $region11: #{srnm_spmm.1} parent=5 // pred_region
        %s128 = ssub.s32 %s11, 1
        // Predicated region
        $region13: #{srnm_spmm.1} parent=11 // pred_check
          %p129 = pneg %p86
        $region14: #{srnm_spmm.1} parent=11 // pred_check_branch
          %131 = sbr.rel (%p129) target = $region16
        $region15: #{srnm_spmm.1} parent=11 // pred_region
          %p132 = scmp.lt.s32.totalorder %s23, 0
          %s133 = scalar_select %p132, %s23, 0
          %p134 = scmp.lt.s32.totalorder %s22, 0
          %s135 = scalar_select %p134, %s22, 0
          %s136 = sadd.s32 %s135, %s133
          %s137 = smul.addr %s136, 4
          %s138 = scalar_lea.vmem %s1, %s137
        $region16: #{srnm_spmm.1} parent=11 // pred_fallthru
          _
      $region12: #{srnm_spmm.1} parent=5 // pred_fallthru
        _
      %p139 = scmp.lt.s32.totalorder %s11, 2
      // Predicated region
      $region17: #{srnm_spmm.1} parent=5 // pred_check
        %p140 = pneg %p139
      $region18: #{srnm_spmm.1} parent=5 // pred_check_branch
        %142 = sbr.rel (%p140) target = $region20
      $region19: #{srnm_spmm.1} parent=5 // pred_region
        // Predicated region
        $region21: #{srnm_spmm.1} parent=19 // pred_check
          %p143 = pneg %p52
        $region22: #{srnm_spmm.1} parent=19 // pred_check_branch
          %145 = sbr.rel (%p143) target = $region24
        $region23: #{srnm_spmm.1} parent=19 // pred_region
          %p146 = scmp.lt.s32.totalorder %s18, 1
          %s147 = scalar_select %p146, %s18, 1
          %p148 = scmp.lt.s32.totalorder %s20, 0
          %s149 = scalar_select %p148, %s20, 0
          %s150 = sadd.s32 %s149, %s147
          %s151 = smul.addr %s150, 4
          %s152 = scalar_lea.vmem %s0, %s151
        $region24: #{srnm_spmm.1} parent=19 // pred_fallthru
          _
      $region20: #{srnm_spmm.1} parent=5 // pred_fallthru
        _
      %p153 = scmp.le.s32.totalorder 1, %s11
      %p154 = scmp.lt.s32.totalorder %s11, 3
      %p155 = pnand %p153, %p154
      %p156 = pneg %p155
      // Predicated region
      $region25: #{srnm_spmm.1} parent=5 // pred_check
        _
      $region26: #{srnm_spmm.1} parent=5 // pred_check_branch
        %158 = sbr.rel (%p155) target = $region28
      $region27: #{srnm_spmm.1} parent=5 // pred_region
        %s159 = ssub.s32 %s11, 1
        %p160 = scmp.lt.s32.totalorder %s21, 1
        %s161 = scalar_select %p160, %s21, 1
        %p162 = scmp.lt.s32.totalorder %s23, 0
        %s163 = scalar_select %p162, %s23, 0
        %s164 = sadd.s32 %s163, %s161
        %s165 = smul.addr %s164, 4
        %s166 = scalar_lea.vmem %s0, %s165
        %p167 = pneg %p58
        %p168 = pneg %p55
        %p169 = scmp.lt.s32.totalorder %s23, 0
        %s170 = scalar_select %p169, %s23, 0
        %p171 = scmp.lt.s32.totalorder %s22, 0
        %s172 = scalar_select %p171, %s22, 0
        %s173 = sadd.s32 %s172, %s170
        %s174 = smul.addr %s173, 4
        %s175 = scalar_lea.vmem %s1, %s174
        %p176 = pneg %p86
        %p177 = pneg %p83
        %p178 = pneg %p114
        %p179 = pneg %p111
        %s180 = sand.u32 %s101, 1
        %s181 = scalar_lea.sflag [#allocation4], %s180
        %s182 = sand.u32 %s101, 1
        %s183 = smul.addr %s182, 8
        %s184 = scalar_lea.vmem [#allocation3], %s183
        %p185 = scmp.lt.s32.totalorder %s21, 1
        %s186 = scalar_select %p185, %s21, 1
        %p187 = scmp.lt.s32.totalorder %s23, 0
        %s188 = scalar_select %p187, %s23, 0
        %s189 = sadd.s32 %s188, %s186
        %s190 = smul.addr %s189, 4
        %s191 = scalar_lea.vmem %s0, %s190
        %p192 = scmp.lt.s32.totalorder %s23, 0
        %s193 = scalar_select %p192, %s23, 0
        %p194 = scmp.lt.s32.totalorder %s22, 0
        %s195 = scalar_select %p194, %s22, 0
        %s196 = sadd.s32 %s195, %s193
        %s197 = smul.addr %s196, 4
        %s198 = scalar_lea.vmem %s1, %s197
        %p200 = scmp.eq.s32.totalorder %s23, 0
        // Predicated region
        $region29: #{srnm_spmm.1} parent=27 // pred_check
          %p201 = pneg %p200
        $region30: #{srnm_spmm.1} parent=27 // pred_check_branch
          %203 = sbr.rel (%p201) target = $region32
        $region31: #{srnm_spmm.1} parent=27 // pred_region
          %vm204 = vcmask 523264
          %205 = vst.msk [vmem:[#allocation2] sm:$0xff] %vm204, 0.0
        $region32: #{srnm_spmm.1} parent=27 // pred_fallthru
          _
        %v206 = vld [vmem:[#allocation2] sm:$0xff]
        %v207 = vld [vmem:[%s191] sm:$0xf]
        %v208 = vld [vmem:[%s198] sm:$0xf]
        %vm209 = vcmask 64512
        %v211 = vsel %vm209, %v207, 0
        %vm213 = vcmask 1043456
        %v215 = vsel %vm213, %v208, 0
        %217 = vmatprep.subr.bf16.mxu0 0
        %218 = vmatpush1.bf16.msra.mxu0 %v215
        %219 = vmatprep.subr.bf16.mxu0 0
        %220 = vmatpush1.bf16.msra.mxu0 0
        %221 = vmatprep.subr.bf16.mxu0 0
        %222 = vmatpush1.bf16.msra.mxu0 0
        %223 = vmatprep.subr.bf16.mxu0 0
        %224 = vmatpush1.bf16.msra.mxu0 0
        %225 = vmatprep.subr.bf16.mxu0 0
        %226 = vmatpush1.bf16.msra.mxu0 0
        %227 = vmatprep.subr.bf16.mxu0 0
        %228 = vmatpush1.bf16.msra.mxu0 0
        %229 = vmatprep.subr.bf16.mxu0 0
        %230 = vmatpush1.bf16.msra.mxu0 0
        %231 = vmatprep.subr.bf16.mxu0 0
        %232 = vmatpush1.bf16.msra.mxu0 0
        %233 = vmatprep.subr.bf16.mxu0 0
        %234 = vmatpush1.bf16.msra.mxu0 0
        %235 = vmatprep.subr.bf16.mxu0 0
        %236 = vmatpush1.bf16.msra.mxu0 0
        %237 = vmatprep.subr.bf16.mxu0 0
        %238 = vmatpush1.bf16.msra.mxu0 0
        %239 = vmatprep.subr.bf16.mxu0 0
        %240 = vmatpush1.bf16.msra.mxu0 0
        %241 = vmatprep.subr.bf16.mxu0 0
        %242 = vmatpush1.bf16.msra.mxu0 0
        %243 = vmatprep.subr.bf16.mxu0 0
        %244 = vmatpush1.bf16.msra.mxu0 0
        %245 = vmatprep.subr.bf16.mxu0 0
        %246 = vmatpush1.bf16.msra.mxu0 0
        %247 = vmatprep.subr.bf16.mxu0 0
        %248 = vmatpush1.bf16.msra.mxu0 0
        %249 = vmatprep.mubr.bf16.mxu0 0
        %250 = vmatmul.mubr.bf16.gmra.mrb[0].mxu0 %v211
        %v251 = vpop.f32.mrb[0].mxu0
        %v252 = vadd.f32 0.0, %v251
        %v253 = vpop.f32.mrb[0].mxu0
        %v254 = vpop.f32.mrb[0].mxu0
        %v255 = vpop.f32.mrb[0].mxu0
        %256 = vdwg.mxu0
        %v257 = vadd.f32 %v206, %v252
        %vm258 = vcmask 523264
        %259 = vst.msk [vmem:[#allocation2] sm:$0xff] %vm258, %v257
        // Predicated region
        $region33: #{srnm_spmm.1} parent=27 // pred_check
          %p260 = pneg %p200
        $region34: #{srnm_spmm.1} parent=27 // pred_check_branch
          %262 = sbr.rel (%p260) target = $region36
        $region35: #{srnm_spmm.1} parent=27 // pred_region
          %v263 = vld [vmem:[#allocation2] sm:$0xff]
          %264 = vst.msk [vmem:[%s184] sm:$0xff] %vm258, %v263
        $region36: #{srnm_spmm.1} parent=27 // pred_fallthru
          _
        %s265 = sand.u32 %s101, 1
        %s266 = scalar_lea.sflag [#allocation4], %s265
        %s267 = sand.u32 %s101, 1
        %s268 = smul.addr %s267, 8
        %s269 = scalar_lea.vmem [#allocation3], %s268
        // Predicated region
        $region37: #{srnm_spmm.1} parent=27 // pred_check
          %p270 = pneg %p111
        $region38: #{srnm_spmm.1} parent=27 // pred_check_branch
          %272 = sbr.rel (%p270) target = $region40
        $region39: #{srnm_spmm.1} parent=27 // pred_region
          %s274 = ssub.s32 128, 128
          %275 = vsyncadd %s266, %s274
          %s276 = sadd.s32 %s22, %s21
          %s277 = smul.addr %s276, 128
          %s278 = scalar_lea.hbm %s2, %s277
          %s280 = sshll.u32 %s269, 4
          %s281 = int_to_ptr.vmem [resolvable:$true] %s280
          %283 = dma.vmem_to_hbm [thread:$0]  %s281, 128, %s278, %s266
        $region40: #{srnm_spmm.1} parent=27 // pred_fallthru
          _
      $region28: #{srnm_spmm.1} parent=5 // pred_fallthru
        _
      %p284 = scmp.le.s32.totalorder 2, %s11
      // Predicated region
      $region41: #{srnm_spmm.1} parent=5 // pred_check
        %p285 = pneg %p284
      $region42: #{srnm_spmm.1} parent=5 // pred_check_branch
        %287 = sbr.rel (%p285) target = $region44
      $region43: #{srnm_spmm.1} parent=5 // pred_region
        %s288 = ssub.s32 %s11, 2
        // Predicated region
        $region45: #{srnm_spmm.1} parent=43 // pred_check
          %p289 = pneg %p117
        $region46: #{srnm_spmm.1} parent=43 // pred_check_branch
          %291 = sbr.rel (%p289) target = $region48
        $region47: #{srnm_spmm.1} parent=43 // pred_region
          %s292 = sand.u32 %s102, 1
          %s293 = scalar_lea.sflag [#allocation4], %s292
          %s294 = sand.u32 %s102, 1
          %s295 = smul.addr %s294, 8
          %s296 = scalar_lea.vmem [#allocation3], %s295
          %297 = dma.done %s293, 128
        $region48: #{srnm_spmm.1} parent=43 // pred_fallthru
          _
      $region44: #{srnm_spmm.1} parent=5 // pred_fallthru
        _
    $region6: #{srnm_spmm.1} parent=1 // loop_footer
      %s15 = sadd.s32 1, %s11
    $region7: #{srnm_spmm.1} parent=1 // loop_footer_branch
      %10 = sbr.rel target = $region3
    $region8: #{srnm_spmm.1} parent=1 // loop_exit
      _
    %298 = vsyncpa [#allocation4], 1
    %s299 = scalar_lea.sflag [#allocation4], 1
    %300 = vsyncpa %s299, 1

</llo_original>
